<compile_context>
chip_gen: v7x
topology: tpu7x:2x2x1
jax: 0.10.0
libtpu: 0.0.40
codegen_flags: <defaults>
</compile_context>

<pallas_src>
import functools

import jax
import jax.numpy as jnp
from jax.experimental import pallas as pl
from jax.experimental.pallas import tpu as pltpu


def _round_up(x, m):
    return ((x + m - 1) // m) * m


def _embeddings_kernel(cols_ref, table_ref, type_row_ref, gamma_ref, beta_ref,
                       out_ref, *, eps):
    tm = cols_ref.shape[0]
    n_rows = table_ref.shape[0]          # V + P rows of the fused word|pos table

    cols = cols_ref[...]                 # (TM, 2) int32: [word col, V + pos col]
    word_col = cols[:, 0:1]
    pos_col = cols[:, 1:2]

    # Single "two-hot" (TM, V+P) @ (V+P, H) MXU matmul gathers word + position
    # embeddings in one pass (columns never collide: word < V <= pos column).
    lane = jax.lax.broadcasted_iota(jnp.int32, (tm, n_rows), 1)
    twohot = jnp.logical_or(lane == word_col, lane == pos_col).astype(jnp.float32)
    emb = jnp.dot(twohot, table_ref[...], preferred_element_type=jnp.float32)

    # token_type_ids are all zeros -> a single broadcast row, no matmul needed.
    emb = emb + type_row_ref[...]

    # Single-pass LayerNorm over the hidden dim (fused sum / sum-of-squares).
    inv_h = 1.0 / emb.shape[-1]
    s = jnp.sum(emb, axis=-1, keepdims=True)
    ss = jnp.sum(emb * emb, axis=-1, keepdims=True)
    mean = s * inv_h
    var = jnp.maximum(ss * inv_h - mean * mean, 0.0)
    normed = (emb - mean) * jax.lax.rsqrt(var + eps)
    out_ref[...] = normed * gamma_ref[...] + beta_ref[...]
    # TODO(synk): dropout omitted (forward treated as eval-mode, p acts as identity)


def transpolymer_embeddings(input_ids, params, *, pad_token_id,
                            layer_norm_eps=1e-12, tile_rows=256):
    """input_ids: (B, S) int32.  Returns (B, S, H) float32 embeddings."""
    B, S = input_ids.shape
    word_tab = params["word_embeddings"]            # (V, H)
    pos_tab = params["position_embeddings"]         # (P, H)
    type_tab = params["token_type_embeddings"]      # (T, H)
    V, H = word_tab.shape
    P = pos_tab.shape[0]

    # Positions reach S + pad_token_id for a fully non-padded row; catch what
    # PyTorch would raise as an index error instead of silently zeroing.
    if P < S + pad_token_id + 1:
        raise ValueError(
            f"max_position_embeddings={P} too small for seq_len={S} with "
            f"pad_token_id={pad_token_id} (need >= {S + pad_token_id + 1})")

    # create_position_ids_from_input_ids (glue, plain JAX)
    mask = (input_ids != pad_token_id).astype(jnp.int32)
    position_ids = jnp.cumsum(mask, axis=1) * mask + pad_token_id

    N = B * S
    # Fused column indices into the concatenated (V+P, H) table.
    word_cols = input_ids.reshape(N).astype(jnp.int32)
    pos_cols = position_ids.reshape(N).astype(jnp.int32) + V
    cols = jnp.stack([word_cols, pos_cols], axis=1)          # (N, 2) int32

    # Row tiling: big tiles for MXU/HBM efficiency, clamped for tiny inputs;
    # pad the row count so the grid divides evenly (extra rows use pad ids).
    tr = int(min(tile_rows, _round_up(N, 8)))
    tr = _round_up(tr, 8)
    n_pad = _round_up(N, tr)
    if n_pad != N:
        pad_row = jnp.array([[pad_token_id, V + pad_token_id]], dtype=jnp.int32)
        cols = jnp.concatenate(
            [cols, jnp.broadcast_to(pad_row, (n_pad - N, 2))], axis=0)

    fused_tab = jnp.concatenate([word_tab, pos_tab], axis=0)  # (V+P, H)
    type_row = type_tab[0:1, :]                               # token type 0 only
    gamma = params["ln_weight"].reshape(1, H)
    beta = params["ln_bias"].reshape(1, H)

    grid = (n_pad // tr,)

    # Explicit VMEM budget: resident fused table (double-buffered by default)
    # plus id/output tiles and the three small vectors, with some headroom.
    table_bytes = (V + P) * H * 4
    tile_bytes = tr * (2 * 4 + H * 4)
    est = 2 * (table_bytes + tile_bytes + 3 * H * 4) + (2 << 20)
    vmem_limit = int(min(max(est, 32 << 20), 112 << 20))

    kernel = functools.partial(_embeddings_kernel, eps=layer_norm_eps)

    out = pl.pallas_call(
        kernel,
        out_shape=jax.ShapeDtypeStruct((n_pad, H), jnp.float32),
        grid_spec=pltpu.PrefetchScalarGridSpec(
            num_scalar_prefetch=0,
            grid=grid,
            in_specs=[
                pl.BlockSpec((tr, 2), lambda i: (i, 0)),            # fused id cols
                pl.BlockSpec(fused_tab.shape, lambda i: (0, 0)),    # word|pos table
                pl.BlockSpec((1, H), lambda i: (0, 0)),             # token-type row 0
                pl.BlockSpec((1, H), lambda i: (0, 0)),             # LN gamma
                pl.BlockSpec((1, H), lambda i: (0, 0)),             # LN beta
            ],
            out_specs=pl.BlockSpec((tr, H), lambda i: (i, 0)),
        ),
        compiler_params=pltpu.CompilerParams(
            dimension_semantics=("parallel",),
            vmem_limit_bytes=vmem_limit),
    )(cols, fused_tab, type_row, gamma, beta)

    return out[:N].reshape(B, S, H)


def init_params(key, *, vocab_size, hidden_size, max_position_embeddings,
                type_vocab_size, pad_token_id):
    k1, k2, k3 = jax.random.split(key, 3)
    word = 0.02 * jax.random.normal(k1, (vocab_size, hidden_size), jnp.float32)
    pos = 0.02 * jax.random.normal(k2, (max_position_embeddings, hidden_size),
                                   jnp.float32)
    typ = 0.02 * jax.random.normal(k3, (type_vocab_size, hidden_size),
                                   jnp.float32)
    # nn.Embedding(padding_idx=...) zeroes the padding row at init
    word = word.at[pad_token_id].set(0.0)
    pos = pos.at[pad_token_id].set(0.0)
    return {
        "word_embeddings": word,
        "position_embeddings": pos,
        "token_type_embeddings": typ,
        "ln_weight": jnp.ones((hidden_size,), jnp.float32),
        "ln_bias": jnp.zeros((hidden_size,), jnp.float32),
    }


def _reference(input_ids, params, pad_token_id, eps):
    mask = (input_ids != pad_token_id).astype(jnp.int32)
    position_ids = jnp.cumsum(mask, axis=1) * mask + pad_token_id
    emb = (params["word_embeddings"][input_ids]
           + params["token_type_embeddings"][jnp.zeros_like(input_ids)]
           + params["position_embeddings"][position_ids])
    mean = emb.mean(-1, keepdims=True)
    var = ((emb - mean) ** 2).mean(-1, keepdims=True)
    return ((emb - mean) * jax.lax.rsqrt(var + eps)
            * params["ln_weight"] + params["ln_bias"])


if __name__ == "__main__":
    # small config consistent with the module
    vocab_size = 32
    hidden_size = 32
    max_position_embeddings = 16
    type_vocab_size = 2
    pad_token_id = 1
    layer_norm_eps = 1e-12
    B, S = 2, 8

    key = jax.random.PRNGKey(0)
    k_param, k_ids = jax.random.split(key)
    params = init_params(
        k_param,
        vocab_size=vocab_size,
        hidden_size=hidden_size,
        max_position_embeddings=max_position_embeddings,
        type_vocab_size=type_vocab_size,
        pad_token_id=pad_token_id,
    )

    input_ids = jax.random.randint(k_ids, (B, S), 0, vocab_size, dtype=jnp.int32)
    # force a couple of padding tokens at the tail of each row
    input_ids = input_ids.at[:, -2:].set(pad_token_id)

    out = transpolymer_embeddings(input_ids, params,
                                  pad_token_id=pad_token_id,
                                  layer_norm_eps=layer_norm_eps)
    out = jax.block_until_ready(out)

    ref = _reference(input_ids, params, pad_token_id, layer_norm_eps)
    assert out.shape == (B, S, hidden_size)
    assert jnp.allclose(out, ref, atol=2e-5, rtol=2e-5)
    print("KERNEL_OK")
</pallas_src>

<mosaic_0001>
module attributes {stable_mosaic.version = 11 : i64} {
  func.func @_embeddings_kernel(%arg0: i32, %arg1: memref<16x2xi32, #tpu.memory_space<vmem>>, %arg2: memref<48x32xf32, #tpu.memory_space<vmem>>, %arg3: memref<1x32xf32, #tpu.memory_space<vmem>>, %arg4: memref<1x32xf32, #tpu.memory_space<vmem>>, %arg5: memref<1x32xf32, #tpu.memory_space<vmem>>, %arg6: memref<16x32xf32, #tpu.memory_space<vmem>>) attributes {dimension_semantics = [#tpu.dimension_semantics<parallel>], iteration_bounds = array<i64: 1>, scalar_prefetch = 0 : i64, scratch_operands = 0 : i64, tpu.core_type = #tpu.core_type<tc>, window_params = [{transform_indices = @transform_0, window_bounds = array<i64: 16, 2>}, {pipeline_mode = #tpu.pipeline_mode<synchronous>, transform_indices = @transform_1, window_bounds = array<i64: 48, 32>}, {pipeline_mode = #tpu.pipeline_mode<synchronous>, transform_indices = @transform_2, window_bounds = array<i64: 1, 32>}, {pipeline_mode = #tpu.pipeline_mode<synchronous>, transform_indices = @transform_3, window_bounds = array<i64: 1, 32>}, {pipeline_mode = #tpu.pipeline_mode<synchronous>, transform_indices = @transform_4, window_bounds = array<i64: 1, 32>}, {transform_indices = @transform_5, window_bounds = array<i64: 16, 32>}]} {
    %c0 = arith.constant 0 : index
    %c0_0 = arith.constant 0 : index
    %0 = vector.load %arg1[%c0, %c0_0] : memref<16x2xi32, #tpu.memory_space<vmem>>, vector<16x2xi32>
    %1 = vector.extract_strided_slice %0 {offsets = [0, 0], sizes = [16, 1], strides = [1, 1]} : vector<16x2xi32> to vector<16x1xi32>
    %2 = vector.extract_strided_slice %0 {offsets = [0, 1], sizes = [16, 1], strides = [1, 1]} : vector<16x2xi32> to vector<16x1xi32>
    %3 = tpu.iota {dimensions = array<i32: 1>} : vector<16x48xi32>
    %4 = vector.broadcast %1 : vector<16x1xi32> to vector<16x48xi32>
    %5 = arith.cmpi eq, %3, %4 : vector<16x48xi32>
    %6 = vector.broadcast %2 : vector<16x1xi32> to vector<16x48xi32>
    %7 = arith.cmpi eq, %3, %6 : vector<16x48xi32>
    %8 = arith.ori %5, %7 : vector<16x48xi1>
    %9 = arith.extui %8 : vector<16x48xi1> to vector<16x48xi32>
    %10 = arith.sitofp %9 : vector<16x48xi32> to vector<16x48xf32>
    %c0_1 = arith.constant 0 : index
    %c0_2 = arith.constant 0 : index
    %11 = vector.load %arg2[%c0_1, %c0_2] : memref<48x32xf32, #tpu.memory_space<vmem>>, vector<48x32xf32>
    %cst = arith.constant dense<0.000000e+00> : vector<16x32xf32>
    %12 = tpu.matmul %10, %11, %cst {dimension_numbers = #tpu.dot_dimension_numbers<[1], [0], [0], [1], [0, 0, 1, 1], [], []>} : vector<16x48xf32>, vector<48x32xf32>, vector<16x32xf32> -> vector<16x32xf32>
    %c0_3 = arith.constant 0 : index
    %c0_4 = arith.constant 0 : index
    %13 = vector.load %arg3[%c0_3, %c0_4] : memref<1x32xf32, #tpu.memory_space<vmem>>, vector<1x32xf32>
    %14 = vector.broadcast %13 : vector<1x32xf32> to vector<16x32xf32>
    %15 = arith.addf %12, %14 : vector<16x32xf32>
    %cst_5 = arith.constant dense<0.000000e+00> : vector<16xf32>
    %16 = vector.multi_reduction <add>, %15, %cst_5 [1] : vector<16x32xf32> to vector<16xf32>
    %17 = vector.shape_cast %16 : vector<16xf32> to vector<16x1xf32>
    %18 = arith.mulf %15, %15 : vector<16x32xf32>
    %cst_6 = arith.constant dense<0.000000e+00> : vector<16xf32>
    %19 = vector.multi_reduction <add>, %18, %cst_6 [1] : vector<16x32xf32> to vector<16xf32>
    %20 = vector.shape_cast %19 : vector<16xf32> to vector<16x1xf32>
    %cst_7 = arith.constant 3.125000e-02 : f32
    %21 = vector.broadcast %cst_7 : f32 to vector<16x1xf32>
    %22 = arith.mulf %17, %21 : vector<16x1xf32>
    %cst_8 = arith.constant 3.125000e-02 : f32
    %23 = vector.broadcast %cst_8 : f32 to vector<16x1xf32>
    %24 = arith.mulf %20, %23 : vector<16x1xf32>
    %25 = arith.mulf %22, %22 : vector<16x1xf32>
    %26 = arith.subf %24, %25 : vector<16x1xf32>
    %cst_9 = arith.constant 0.000000e+00 : f32
    %27 = vector.broadcast %cst_9 : f32 to vector<16x1xf32>
    %28 = arith.maximumf %26, %27 : vector<16x1xf32>
    %29 = vector.broadcast %22 : vector<16x1xf32> to vector<16x32xf32>
    %30 = arith.subf %15, %29 : vector<16x32xf32>
    %cst_10 = arith.constant 9.99999996E-13 : f32
    %31 = vector.broadcast %cst_10 : f32 to vector<16x1xf32>
    %32 = arith.addf %28, %31 : vector<16x1xf32>
    %33 = math.rsqrt %32 : vector<16x1xf32>
    %34 = vector.broadcast %33 : vector<16x1xf32> to vector<16x32xf32>
    %35 = arith.mulf %30, %34 : vector<16x32xf32>
    %c0_11 = arith.constant 0 : index
    %c0_12 = arith.constant 0 : index
    %36 = vector.load %arg4[%c0_11, %c0_12] : memref<1x32xf32, #tpu.memory_space<vmem>>, vector<1x32xf32>
    %37 = vector.broadcast %36 : vector<1x32xf32> to vector<16x32xf32>
    %38 = arith.mulf %35, %37 : vector<16x32xf32>
    %c0_13 = arith.constant 0 : index
    %c0_14 = arith.constant 0 : index
    %39 = vector.load %arg5[%c0_13, %c0_14] : memref<1x32xf32, #tpu.memory_space<vmem>>, vector<1x32xf32>
    %40 = vector.broadcast %39 : vector<1x32xf32> to vector<16x32xf32>
    %41 = arith.addf %38, %40 : vector<16x32xf32>
    %c0_15 = arith.constant 0 : index
    %c0_16 = arith.constant 0 : index
    %42 = vector.load %arg6[%c0_15, %c0_16] : memref<16x32xf32, #tpu.memory_space<vmem>>, vector<16x32xf32>
    tpu.vector_store %arg6[%c0_15, %c0_16], %41 {strides = array<i32>} : memref<16x32xf32, #tpu.memory_space<vmem>>, vector<16x32xf32>,
    return
  }
  func.func @transform_0(%arg0: i32) -> (i32, i32) {
    %c0_i32 = arith.constant 0 : i32
    %c0_i32_0 = arith.constant 0 : i32
    return %arg0, %c0_i32 : i32, i32
  }
  func.func @transform_1(%arg0: i32) -> (i32, i32) {
    %c0_i32 = arith.constant 0 : i32
    %c0_i32_0 = arith.constant 0 : i32
    %c0_i32_1 = arith.constant 0 : i32
    return %c0_i32, %c0_i32_0 : i32, i32
  }
  func.func @transform_2(%arg0: i32) -> (i32, i32) {
    %c0_i32 = arith.constant 0 : i32
    %c0_i32_0 = arith.constant 0 : i32
    %c0_i32_1 = arith.constant 0 : i32
    return %c0_i32, %c0_i32_0 : i32, i32
  }
  func.func @transform_3(%arg0: i32) -> (i32, i32) {
    %c0_i32 = arith.constant 0 : i32
    %c0_i32_0 = arith.constant 0 : i32
    %c0_i32_1 = arith.constant 0 : i32
    return %c0_i32, %c0_i32_0 : i32, i32
  }
  func.func @transform_4(%arg0: i32) -> (i32, i32) {
    %c0_i32 = arith.constant 0 : i32
    %c0_i32_0 = arith.constant 0 : i32
    %c0_i32_1 = arith.constant 0 : i32
    return %c0_i32, %c0_i32_0 : i32, i32
  }
  func.func @transform_5(%arg0: i32) -> (i32, i32) {
    %c0_i32 = arith.constant 0 : i32
    %c0_i32_0 = arith.constant 0 : i32
    return %arg0, %c0_i32 : i32, i32
  }
}

</mosaic_0001>

<llo_original>
// kernel: tpu_custom_call.1
$region0: #{tpu_custom_call.1}
  #allocation0 [shape = 'u32[]', space=smem, size = 0x4, offset = 0x4, fixed_abs, tag = 'smem constant byte address 0x4 - core index']
  #allocation1 [shape = 'u32[144,128]{1,0:T(1,128)}', space=vmem, size = 0x12000, scoped, tag = 'internal scratch']
  %s0 = inlined_call_operand.vmem [shape: s32[16,2], index: 0, kind: input, shape index: {}]
  %s1 = inlined_call_operand.vmem [shape: f32[48,32], index: 1, kind: input, shape index: {}]
  %s2 = inlined_call_operand.vmem [shape: f32[1,32], index: 2, kind: input, shape index: {}]
  %s3 = inlined_call_operand.vmem [shape: f32[1,32], index: 3, kind: input, shape index: {}]
  %s4 = inlined_call_operand.vmem [shape: f32[1,32], index: 4, kind: input, shape index: {}]
  %s5 = inlined_call_operand.hbm [shape: f32[16,32], index: 5, kind: output, shape index: {}]
  %s6 = sld [smem:[#allocation0]]
  $region30: #{tpu_custom_call.1} parent=0
    _
  %s8 = ssub.s32 1, %s6
  %s9 = scalar_select 0, %s8, %s6
  $region1: #{tpu_custom_call.1} parent=0
    #allocation2 [shape = 'u8[8192]{0}', space=vmem, size = 0x2000, scoped, tag = 'output window, operand 0, single buffered']
    #allocation3 [shape = 's32[1]{0}', space=sflag, size = 0x4, scoped, tag = 'scoped memory for tpu_custom_call.1']
    %10 = vsyncpa [#allocation3], 0
    // Predicated region
    $region2: #{tpu_custom_call.1} parent=1 // pred_check
      _
    $region3: #{tpu_custom_call.1} parent=1 // pred_check_branch
      %12 = sbr.rel (0) target = $region5
    $region4: #{tpu_custom_call.1} parent=1 // pred_region
      _
    $region5: #{tpu_custom_call.1} parent=1 // pred_fallthru
      _
    // Predicated region
    $region6: #{tpu_custom_call.1} parent=1 // pred_check
      _
    $region7: #{tpu_custom_call.1} parent=1 // pred_check_branch
      %14 = sbr.rel (0) target = $region9
    $region8: #{tpu_custom_call.1} parent=1 // pred_region
      _
    $region9: #{tpu_custom_call.1} parent=1 // pred_fallthru
      _
    // Predicated region
    $region10: #{tpu_custom_call.1} parent=1 // pred_check
      _
    $region11: #{tpu_custom_call.1} parent=1 // pred_check_branch
      %16 = sbr.rel (0) target = $region13
    $region12: #{tpu_custom_call.1} parent=1 // pred_region
      _
    $region13: #{tpu_custom_call.1} parent=1 // pred_fallthru
      _
    // Predicated region
    $region14: #{tpu_custom_call.1} parent=1 // pred_check
      _
    $region15: #{tpu_custom_call.1} parent=1 // pred_check_branch
      %18 = sbr.rel (0) target = $region17
    $region16: #{tpu_custom_call.1} parent=1 // pred_region
      _
    $region17: #{tpu_custom_call.1} parent=1 // pred_fallthru
      _
    // Predicated region
    $region18: #{tpu_custom_call.1} parent=1 // pred_check
      _
    $region19: #{tpu_custom_call.1} parent=1 // pred_check_branch
      %20 = sbr.rel (0) target = $region21
    $region20: #{tpu_custom_call.1} parent=1 // pred_region
      _
    $region21: #{tpu_custom_call.1} parent=1 // pred_fallthru
      _
    %v21 = vld [vmem:[%s0] sm:$0xff]
    %v22 = vld [vmem:[%s0 + $0x8] sm:$0xff]
    %v23 = vlaneseq
    %v24 = vand.u32 %v23, 127
    %25 = vset.pattern.permute.xlu0 0
    %26 = vperm.xlu0 %25, %v21
    %v27 = vpop.permute.xlu0 %26
    %28 = vset.pattern.permute.xlu0 0
    %29 = vperm.xlu0 %28, %v22
    %v30 = vpop.permute.xlu0 %29
    %vm31 = vcmp.eq.s32.totalorder %v24, %v27
    %vm32 = vcmp.eq.s32.totalorder %v24, %v30
    %33 = vset.pattern.permute.xlu0 1
    %34 = vperm.xlu0 %33, %v21
    %v35 = vpop.permute.xlu0 %34
    %36 = vset.pattern.permute.xlu0 1
    %37 = vperm.xlu0 %36, %v22
    %v38 = vpop.permute.xlu0 %37
    %vm39 = vcmp.eq.s32.totalorder %v24, %v35
    %vm40 = vcmp.eq.s32.totalorder %v24, %v38
    %vm41 = vmor %vm31, %vm39
    %vm42 = vmor %vm32, %vm40
    %v43 = vsel %vm41, 1, 0
    %v44 = vsel %vm42, 1, 0
    %v45 = vcvt.s32.f32 %v43
    %v46 = vcvt.s32.f32 %v44
    %v47 = vld [vmem:[%s1] sm:$0xff]
    %v48 = vld [vmem:[%s1 + $0x8] sm:$0xff]
    %v49 = vld [vmem:[%s1 + $0x10] sm:$0xff]
    %v50 = vld [vmem:[%s1 + $0x18] sm:$0xff]
    %v51 = vld [vmem:[%s1 + $0x20] sm:$0xff]
    %v52 = vld [vmem:[%s1 + $0x28] sm:$0xff]
    %v53 = vld [vmem:[%s2] sm:$0x1]
    %v55 = vlaneseq
    %v56 = vshrl.u32 %v55, 7
    %v57 = vsub.s32 0, %v56
    %v58 = vrot.slane %v53, %v57
    %vm60 = vcmask 392192
    %v62 = vsel %vm60, %v45, 0
    %v65 = vsel %vm60, %v46, 0
    %67 = vmatprep.subr.mxu0 0.0
    %68 = vmatpush1.msra.mxu0 %v47
    %69 = vmatprep.subr.mxu0 0.0
    %70 = vmatpush1.msra.mxu0 %v48
    %71 = vmatprep.subr.mxu0 0.0
    %72 = vmatpush1.msra.mxu0 %v49
    %73 = vmatprep.subr.mxu0 0.0
    %74 = vmatpush1.msra.mxu0 %v50
    %75 = vmatprep.subr.mxu0 0.0
    %76 = vmatpush1.msra.mxu0 %v51
    %77 = vmatprep.subr.mxu0 0.0
    %78 = vmatpush1.msra.mxu0 %v52
    %79 = vmatprep.subr.mxu0 0.0
    %80 = vmatpush1.msra.mxu0 0.0
    %81 = vmatprep.subr.mxu0 0.0
    %82 = vmatpush1.msra.mxu0 0.0
    %83 = vmatprep.subr.mxu0 0.0
    %84 = vmatpush1.msra.mxu0 0.0
    %85 = vmatprep.subr.mxu0 0.0
    %86 = vmatpush1.msra.mxu0 0.0
    %87 = vmatprep.subr.mxu0 0.0
    %88 = vmatpush1.msra.mxu0 0.0
    %89 = vmatprep.subr.mxu0 0.0
    %90 = vmatpush1.msra.mxu0 0.0
    %91 = vmatprep.subr.mxu0 0.0
    %92 = vmatpush1.msra.mxu0 0.0
    %93 = vmatprep.subr.mxu0 0.0
    %94 = vmatpush1.msra.mxu0 0.0
    %95 = vmatprep.subr.mxu0 0.0
    %96 = vmatpush1.msra.mxu0 0.0
    %97 = vmatprep.subr.mxu0 0.0
    %98 = vmatpush1.msra.mxu0 0.0
    %99 = vmatprep.subr.mxu0 0.0
    %100 = vmatpush1.msra.mxu0 0.0
    %101 = vmatprep.subr.mxu0 0.0
    %102 = vmatpush1.msra.mxu0 0.0
    %103 = vmatprep.subr.mxu0 0.0
    %104 = vmatpush1.msra.mxu0 0.0
    %105 = vmatprep.subr.mxu0 0.0
    %106 = vmatpush1.msra.mxu0 0.0
    %107 = vmatprep.subr.mxu0 0.0
    %108 = vmatpush1.msra.mxu0 0.0
    %109 = vmatprep.subr.mxu0 0.0
    %110 = vmatpush1.msra.mxu0 0.0
    %111 = vmatprep.subr.mxu0 0.0
    %112 = vmatpush1.msra.mxu0 0.0
    %113 = vmatprep.subr.mxu0 0.0
    %114 = vmatpush1.msra.mxu0 0.0
    %115 = vmatprep.subr.mxu0 0.0
    %116 = vmatpush1.msra.mxu0 0.0
    %117 = vmatprep.subr.mxu0 0.0
    %118 = vmatpush1.msra.mxu0 0.0
    %119 = vmatprep.subr.mxu0 0.0
    %120 = vmatpush1.msra.mxu0 0.0
    %121 = vmatprep.subr.mxu0 0.0
    %122 = vmatpush1.msra.mxu0 0.0
    %123 = vmatprep.subr.mxu0 0.0
    %124 = vmatpush1.msra.mxu0 0.0
    %125 = vmatprep.subr.mxu0 0.0
    %126 = vmatpush1.msra.mxu0 0.0
    %127 = vmatprep.subr.mxu0 0.0
    %128 = vmatpush1.msra.mxu0 0.0
    %129 = vmatprep.subr.mxu0 0.0
    %130 = vmatpush1.msra.mxu0 0.0
    %131 = vmatprep.mubr.f32.mxu0 0.0
    %132 = vmatmul.mubr.f32.gmra.mrb[0].mxu0 %v62
    %v133 = vpop.f32.mrb[0].mxu0
    %v134 = vadd.f32 %v58, %v133
    %v135 = vpop.f32.mrb[0].mxu0
    %136 = vmatprep.mubr.f32.mxu0 0.0
    %137 = vmatmul.mubr.f32.gmra.mrb[0].mxu0 %v65
    %v138 = vpop.f32.mrb[0].mxu0
    %v139 = vadd.f32 %v58, %v138
    %v140 = vpop.f32.mrb[0].mxu0
    %141 = vdwg.mxu0
    %vm142 = vcmask 261120
    %v143 = vsel %vm142, %v134, 0.0
    %144 = vadd.xlane.f32.xlu0 %v143
    %v145 = vpop.xlane.xlu0 %144
    %v146 = vsel %vm142, %v139, 0.0
    %147 = vadd.xlane.f32.xlu0 %v146
    %v148 = vpop.xlane.xlu0 %147
    %v149 = vmul.f32 %v134, %v134
    %v150 = vmul.f32 %v139, %v139
    %v151 = vsel %vm142, %v149, 0.0
    %152 = vadd.xlane.f32.xlu0 %v151
    %v153 = vpop.xlane.xlu0 %152
    %v154 = vsel %vm142, %v150, 0.0
    %155 = vadd.xlane.f32.xlu0 %v154
    %v156 = vpop.xlane.xlu0 %155
    %v157 = vmul.f32 %v145, 0.03125
    %v158 = vmul.f32 %v148, 0.03125
    %v159 = vmul.f32 %v153, 0.03125
    %v160 = vmul.f32 %v156, 0.03125
    %v161 = vmul.f32 %v157, %v157
    %v162 = vmul.f32 %v158, %v158
    %v163 = vsub.f32 %v159, %v161
    %v164 = vsub.f32 %v160, %v162
    %v165 = vmax.f32 %v163, 0.0
    %v166 = vmax.f32 %v164, 0.0
    %v167 = vsub.f32 %v134, %v157
    %v168 = vsub.f32 %v139, %v158
    %v169 = vadd.f32 %v165, 1e-12
    %v170 = vadd.f32 %v166, 1e-12
    %v171 = vrsqrt.pop %v169
    %v172 = vrsqrt.pop %v170
    %v173 = vmul.f32 %v167, %v171
    %v174 = vmul.f32 %v168, %v172
    %v175 = vld [vmem:[%s3] sm:$0x1]
    %v177 = vlaneseq
    %v178 = vshrl.u32 %v177, 7
    %v179 = vsub.s32 0, %v178
    %v180 = vrot.slane %v175, %v179
    %v182 = vmul.f32 %v173, %v180
    %v183 = vmul.f32 %v174, %v180
    %v184 = vld [vmem:[%s4] sm:$0x1]
    %v186 = vlaneseq
    %v187 = vshrl.u32 %v186, 7
    %v188 = vsub.s32 0, %v187
    %v189 = vrot.slane %v184, %v188
    %v191 = vadd.f32 %v182, %v189
    %v192 = vadd.f32 %v183, %v189
    %193 = vst.msk [vmem:[#allocation2] sm:$0xff] %vm142, %v191
    %194 = vst.msk [vmem:[#allocation2 + $0x8] sm:$0xff] %vm142, %v192
    // Predicated region
    $region22: #{tpu_custom_call.1} parent=1 // pred_check
      _
    $region23: #{tpu_custom_call.1} parent=1 // pred_check_branch
      %196 = sbr.rel (0) target = $region25
    $region24: #{tpu_custom_call.1} parent=1 // pred_region
      %s198 = ssub.s32 256, 256
      %199 = vsyncadd [#allocation3], %s198
      %s200 = sshll.u32 [#allocation2], 4
      %s201 = int_to_ptr.vmem [resolvable:$true] %s200
      %206 = dma.vmem_to_hbm [thread:$0]  %s201, 256, %s5, [#allocation3], 128, 128, 8
    $region25: #{tpu_custom_call.1} parent=1 // pred_fallthru
      _
    // Predicated region
    $region26: #{tpu_custom_call.1} parent=1 // pred_check
      _
    $region27: #{tpu_custom_call.1} parent=1 // pred_check_branch
      %208 = sbr.rel (0) target = $region29
    $region28: #{tpu_custom_call.1} parent=1 // pred_region
      %209 = dma.done [#allocation3], 256
    $region29: #{tpu_custom_call.1} parent=1 // pred_fallthru
      _
    %210 = vsyncpa [#allocation3], 1

</llo_original>
